<compile_context>
chip_gen: v6e
topology: v6e:2x2x1
jax: 0.10.0
libtpu: 0.0.40
codegen_flags: <defaults>
</compile_context>

<pallas_src>
import functools

import jax
import jax.numpy as jnp
import numpy as np
from jax.experimental import pallas as pl
from jax.experimental.pallas import tpu as pltpu


def _pick_row_tile(H, W, K, cap_lanes=8192):
    """Largest TH with H % TH == 0, (TH*W) % 128 == 0, (K-1)*(W+1) <= TH*W <= cap, TH < H.

    Returns None when no such tile exists (caller falls back to a single full-image tile)."""
    halo = (K - 1) * (W + 1)
    best = None
    for th in range(1, H):
        tl = th * W
        if H % th == 0 and tl % 128 == 0 and halo <= tl <= cap_lanes:
            best = th
    return best


def _conv_bn_act_kernel(col_ref, xa_ref, xb_ref, w_ref, shift_ref, o_ref, *,
                        K, pad, W, TL, neg_slope, apply_act, single_tile):
    # col_ref:   (1, TL) int32   w-coordinate (column within the image row) of every lane
    # xa_ref:    (1, C_in, TL)   flat bf16 input block for this row tile      (or full slab)
    # xb_ref:    (1, C_in, TL)   the NEXT flat block (vertical halo)          (ignored if single)
    # w_ref:     (C_out, K*K*C_in) f32 weights with the BN scale folded in (tap-major, c-minor)
    # shift_ref: (C_out, 1) f32  folded BN shift (or conv bias)
    # o_ref:     (1, C_out, TL)  lane-dense output block (seamless NCHW flat layout)
    col = col_ref[...]
    if single_tile:
        seg = xa_ref[0].astype(jnp.float32)                     # (C_in, Lpad)
    else:
        # Two adjacent 128-aligned blocks cover this tile plus its bottom halo.
        seg = jnp.concatenate([xa_ref[0], xb_ref[0]], axis=-1).astype(jnp.float32)

    taps = []
    for kh in range(K):
        for kw in range(K):
            off = kh * W + kw                                   # static lane offset into seg
            win = seg[:, off:off + TL]                          # (C_in, TL)
            dw = kw - pad
            if dw < 0:                                          # zero wrapped left columns
                win = jnp.where(col >= -dw, win, 0.0)
            elif dw > 0:                                        # zero wrapped right columns
                win = jnp.where(col < W - dw, win, 0.0)
            taps.append(win)
    rhs = jnp.concatenate(taps, axis=0)                         # (K*K*C_in, TL) im2col stack

    y = jnp.dot(w_ref[...], rhs, preferred_element_type=jnp.float32)   # (C_out, TL), one matmul
    y = y + shift_ref[...]                                      # BN shift (scale already in w)
    if apply_act:
        y = jnp.where(y > 0, y, neg_slope * y)                  # LeakyReLU(0.1)
    o_ref[0] = y.astype(o_ref.dtype)


def conv_bn_act(x, w, scale, shift, *, padding, negative_slope=0.1, apply_act=True,
                row_tile_cap=8192):
    """Fused stride-1 'same' Conv2d (scale folded into weights) + shift + optional LeakyReLU.

    x: (N, C_in, H, W) f32; w: (C_out, C_in, K, K); scale/shift: (C_out,).  Returns NCHW f32."""
    N, C_in, H, W = x.shape
    C_out, C_in_w, KH, KW = w.shape
    assert C_in_w == C_in and KH == KW, "square kernel expected"
    K = KH
    p = padding
    assert 2 * p == K - 1, "only stride-1 'same' convolutions are supported"

    TH = _pick_row_tile(H, W, K, row_tile_cap)
    single_tile = TH is None
    if single_tile:
        TH = H
    TL = TH * W
    n_h = H // TH

    # Flat spatial layout with a small zero halo: p rows (+ p elems column shift) on each side.
    Z = p * W + p
    Lpad = (H * W + 2 * Z) if single_tile else (n_h + 1) * TL
    xflat = jnp.pad(x.reshape(N, C_in, H * W).astype(jnp.bfloat16),
                    ((0, 0), (0, 0), (Z, Lpad - H * W - Z)))

    # Fold the affine scale into the weights; layout (C_out, kh, kw, c) -> (C_out, K*K*C_in).
    wk = w.astype(jnp.float32) * scale.astype(jnp.float32)[:, None, None, None]
    wk = jnp.transpose(wk, (0, 2, 3, 1)).reshape(C_out, K * K * C_in)
    shift2 = shift.astype(jnp.float32).reshape(C_out, 1)
    colmap = jnp.asarray((np.arange(TL) % W).reshape(1, TL), dtype=jnp.int32)

    kernel = functools.partial(
        _conv_bn_act_kernel, K=K, pad=p, W=W, TL=TL,
        neg_slope=negative_slope, apply_act=apply_act, single_tile=single_tile)

    if single_tile:
        xa_map = xb_map = lambda n, h: (n, 0, 0)
        x_block = (1, C_in, Lpad)
    else:
        xa_map = lambda n, h: (n, 0, h)
        xb_map = lambda n, h: (n, 0, h + 1)       # adjacent block provides the bottom halo
        x_block = (1, C_in, TL)

    # Per-step VMEM budget: double-buffered blocks + in-kernel f32 values; clamp to a safe range.
    x_block_bytes = C_in * x_block[2] * 2
    need = (4 * x_block_bytes                      # two bf16 input blocks, double-buffered
            + 2 * C_out * TL * 4                   # output block, double-buffered
            + 2 * TL * 4                           # column map block
            + (K * K * C_in + 2 * C_in) * TL * 4   # im2col stack + f32 halo segment (values)
            + 2 * C_out * TL * 4                   # matmul result / epilogue values
            + C_out * (K * K * C_in + 1) * 8)      # weights + shift
    vmem_limit = int(min(max(2 * need, 32 * 1024 * 1024), 48 * 1024 * 1024))

    out = pl.pallas_call(
        kernel,
        out_shape=jax.ShapeDtypeStruct((N, C_out, H * W), jnp.float32),
        grid_spec=pltpu.PrefetchScalarGridSpec(
            num_scalar_prefetch=0,
            grid=(N, n_h),
            in_specs=[
                pl.BlockSpec((1, TL), lambda n, h: (0, 0)),
                pl.BlockSpec(x_block, xa_map),
                pl.BlockSpec(x_block, xb_map),
                pl.BlockSpec((C_out, K * K * C_in), lambda n, h: (0, 0)),
                pl.BlockSpec((C_out, 1), lambda n, h: (0, 0)),
            ],
            out_specs=pl.BlockSpec((1, C_out, TL), lambda n, h: (n, 0, h)),
        ),
        compiler_params=pltpu.CompilerParams(
            dimension_semantics=("parallel", "parallel"),
            vmem_limit_bytes=vmem_limit),
    )(colmap, xflat, xflat, wk, shift2)

    # Metadata-only reshape back to NCHW (row-major split of the last axis, no copy).
    return out.reshape(N, C_out, H, W)


def cnn_block_forward(x, w, gamma, beta, running_mean, running_var, *,
                      eps=1e-5, negative_slope=0.1, padding=1):
    """CNNBlock (use_batch_norm=True): Conv2d(bias=False) + BatchNorm2d (eval) + LeakyReLU."""
    scale = gamma / jnp.sqrt(running_var + eps)
    shift = beta - running_mean * scale
    return conv_bn_act(x, w, scale, shift, padding=padding,
                       negative_slope=negative_slope, apply_act=True)


def cnn_block_forward_no_bn(x, w, bias, *, padding=1):
    """CNNBlock (use_batch_norm=False): Conv2d(bias=True) only, no BN, no activation."""
    ones = jnp.ones((w.shape[0],), jnp.float32)
    return conv_bn_act(x, w, ones, bias, padding=padding, apply_act=False)


# ----------------------------- numpy (float64) reference -----------------------------
def ref_conv_np(x, w, pad):
    x = np.asarray(x, np.float64)
    w = np.asarray(w, np.float64)
    N, C_in, H, W = x.shape
    C_out, _, K, _ = w.shape
    xp = np.pad(x, ((0, 0), (0, 0), (pad, pad), (pad, pad)))
    y = np.zeros((N, C_out, H, W), np.float64)
    for kh in range(K):
        for kw in range(K):
            win = xp[:, :, kh:kh + H, kw:kw + W]
            y += np.einsum("nchw,oc->nohw", win, w[:, :, kh, kw])
    return y


def ref_block_np(x, w, gamma, beta, mean, var, eps=1e-5, slope=0.1, pad=1):
    y = ref_conv_np(x, w, pad)
    s = np.asarray(gamma, np.float64) / np.sqrt(np.asarray(var, np.float64) + eps)
    b = np.asarray(beta, np.float64) - np.asarray(mean, np.float64) * s
    y = y * s[None, :, None, None] + b[None, :, None, None]
    return np.where(y > 0, y, slope * y)


if __name__ == "__main__":
    key = jax.random.PRNGKey(0)
    kx, kw_, kg, kb, km, kv, kx2, kw2, kb2 = jax.random.split(key, 9)

    # Small stand-in for the module's (1, 3, 160, 160) input; exercises the multi-row-tile path.
    N, C_in, H, W = 2, 3, 32, 32
    C_out, K = 16, 3

    x = jax.random.normal(kx, (N, C_in, H, W), jnp.float32)
    w = jax.random.normal(kw_, (C_out, C_in, K, K), jnp.float32) * 0.2
    gamma = jax.random.uniform(kg, (C_out,), jnp.float32, 0.5, 1.5)
    beta = jax.random.normal(kb, (C_out,), jnp.float32) * 0.1
    running_mean = jax.random.normal(km, (C_out,), jnp.float32) * 0.1
    running_var = jax.random.uniform(kv, (C_out,), jnp.float32, 0.5, 1.5)

    out = jax.block_until_ready(
        cnn_block_forward(x, w, gamma, beta, running_mean, running_var))
    ref = ref_block_np(x, w, gamma, beta, running_mean, running_var)
    np.testing.assert_allclose(np.asarray(out), ref, rtol=3e-2, atol=3e-2)

    # use_batch_norm=False branch (Conv2d with bias, no activation); single-tile fallback path.
    N2, C2_in, H2, W2, C2_out = 1, 3, 8, 16, 8
    x2 = jax.random.normal(kx2, (N2, C2_in, H2, W2), jnp.float32)
    w2 = jax.random.normal(kw2, (C2_out, C2_in, K, K), jnp.float32) * 0.2
    b2 = jax.random.normal(kb2, (C2_out,), jnp.float32) * 0.1
    out2 = jax.block_until_ready(cnn_block_forward_no_bn(x2, w2, b2))
    ref2 = ref_conv_np(x2, w2, 1) + np.asarray(b2, np.float64)[None, :, None, None]
    np.testing.assert_allclose(np.asarray(out2), ref2, rtol=3e-2, atol=3e-2)

    print("KERNEL_OK")
</pallas_src>

<mosaic_0001>
module attributes {stable_mosaic.version = 11 : i64} {
  func.func @_conv_bn_act_kernel(%arg0: i32, %arg1: i32, %arg2: memref<1x512xi32, #tpu.memory_space<vmem>>, %arg3: memref<1x3x512xbf16, #tpu.memory_space<vmem>>, %arg4: memref<1x3x512xbf16, #tpu.memory_space<vmem>>, %arg5: memref<16x27xf32, #tpu.memory_space<vmem>>, %arg6: memref<16x1xf32, #tpu.memory_space<vmem>>, %arg7: memref<1x16x512xf32, #tpu.memory_space<vmem>>) attributes {dimension_semantics = [#tpu.dimension_semantics<parallel>, #tpu.dimension_semantics<parallel>], iteration_bounds = array<i64: 2, 2>, scalar_prefetch = 0 : i64, scratch_operands = 0 : i64, tpu.core_type = #tpu.core_type<tc>, window_params = [{pipeline_mode = #tpu.pipeline_mode<synchronous>, transform_indices = @transform_0, window_bounds = array<i64: 1, 512>}, {transform_indices = @transform_1, window_bounds = array<i64: 1, 3, 512>}, {transform_indices = @transform_2, window_bounds = array<i64: 1, 3, 512>}, {pipeline_mode = #tpu.pipeline_mode<synchronous>, transform_indices = @transform_3, window_bounds = array<i64: 16, 27>}, {pipeline_mode = #tpu.pipeline_mode<synchronous>, transform_indices = @transform_4, window_bounds = array<i64: 16, 1>}, {transform_indices = @transform_5, window_bounds = array<i64: 1, 16, 512>}]} {
    %c0 = arith.constant 0 : index
    %c0_0 = arith.constant 0 : index
    %0 = vector.load %arg2[%c0, %c0_0] : memref<1x512xi32, #tpu.memory_space<vmem>>, vector<1x512xi32>
    %c0_1 = arith.constant 0 : index
    %c0_2 = arith.constant 0 : index
    %c0_3 = arith.constant 0 : index
    %1 = vector.load %arg3[%c0_1, %c0_2, %c0_3] : memref<1x3x512xbf16, #tpu.memory_space<vmem>>, vector<1x3x512xbf16>
    %2 = vector.shape_cast %1 : vector<1x3x512xbf16> to vector<3x512xbf16>
    %c0_4 = arith.constant 0 : index
    %c0_5 = arith.constant 0 : index
    %c0_6 = arith.constant 0 : index
    %3 = vector.load %arg4[%c0_4, %c0_5, %c0_6] : memref<1x3x512xbf16, #tpu.memory_space<vmem>>, vector<1x3x512xbf16>
    %4 = vector.shape_cast %3 : vector<1x3x512xbf16> to vector<3x512xbf16>
    %5 = tpu.concatenate %2, %4 in 1 : vector<3x512xbf16>, vector<3x512xbf16> -> vector<3x1024xbf16>
    %6 = arith.extf %5 : vector<3x1024xbf16> to vector<3x1024xf32>
    %7 = vector.extract_strided_slice %6 {offsets = [0, 0], sizes = [3, 512], strides = [1, 1]} : vector<3x1024xf32> to vector<3x512xf32>
    %c1_i32 = arith.constant 1 : i32
    %8 = vector.broadcast %c1_i32 : i32 to vector<1x512xi32>
    %9 = arith.cmpi sge, %0, %8 : vector<1x512xi32>
    %cst = arith.constant 0.000000e+00 : f32
    %10 = vector.shape_cast %9 : vector<1x512xi1> to vector<1x512xi1>
    %11 = vector.broadcast %10 : vector<1x512xi1> to vector<3x512xi1>
    %12 = vector.broadcast %cst : f32 to vector<3x512xf32>
    %13 = arith.select %11, %7, %12 : vector<3x512xi1>, vector<3x512xf32>
    %14 = vector.extract_strided_slice %6 {offsets = [0, 1], sizes = [3, 512], strides = [1, 1]} : vector<3x1024xf32> to vector<3x512xf32>
    %15 = vector.extract_strided_slice %6 {offsets = [0, 2], sizes = [3, 512], strides = [1, 1]} : vector<3x1024xf32> to vector<3x512xf32>
    %c31_i32 = arith.constant 31 : i32
    %16 = vector.broadcast %c31_i32 : i32 to vector<1x512xi32>
    %17 = arith.cmpi slt, %0, %16 : vector<1x512xi32>
    %cst_7 = arith.constant 0.000000e+00 : f32
    %18 = vector.shape_cast %17 : vector<1x512xi1> to vector<1x512xi1>
    %19 = vector.broadcast %18 : vector<1x512xi1> to vector<3x512xi1>
    %20 = vector.broadcast %cst_7 : f32 to vector<3x512xf32>
    %21 = arith.select %19, %15, %20 : vector<3x512xi1>, vector<3x512xf32>
    %22 = vector.extract_strided_slice %6 {offsets = [0, 32], sizes = [3, 512], strides = [1, 1]} : vector<3x1024xf32> to vector<3x512xf32>
    %c1_i32_8 = arith.constant 1 : i32
    %23 = vector.broadcast %c1_i32_8 : i32 to vector<1x512xi32>
    %24 = arith.cmpi sge, %0, %23 : vector<1x512xi32>
    %cst_9 = arith.constant 0.000000e+00 : f32
    %25 = vector.shape_cast %24 : vector<1x512xi1> to vector<1x512xi1>
    %26 = vector.broadcast %25 : vector<1x512xi1> to vector<3x512xi1>
    %27 = vector.broadcast %cst_9 : f32 to vector<3x512xf32>
    %28 = arith.select %26, %22, %27 : vector<3x512xi1>, vector<3x512xf32>
    %29 = vector.extract_strided_slice %6 {offsets = [0, 33], sizes = [3, 512], strides = [1, 1]} : vector<3x1024xf32> to vector<3x512xf32>
    %30 = vector.extract_strided_slice %6 {offsets = [0, 34], sizes = [3, 512], strides = [1, 1]} : vector<3x1024xf32> to vector<3x512xf32>
    %c31_i32_10 = arith.constant 31 : i32
    %31 = vector.broadcast %c31_i32_10 : i32 to vector<1x512xi32>
    %32 = arith.cmpi slt, %0, %31 : vector<1x512xi32>
    %cst_11 = arith.constant 0.000000e+00 : f32
    %33 = vector.shape_cast %32 : vector<1x512xi1> to vector<1x512xi1>
    %34 = vector.broadcast %33 : vector<1x512xi1> to vector<3x512xi1>
    %35 = vector.broadcast %cst_11 : f32 to vector<3x512xf32>
    %36 = arith.select %34, %30, %35 : vector<3x512xi1>, vector<3x512xf32>
    %37 = vector.extract_strided_slice %6 {offsets = [0, 64], sizes = [3, 512], strides = [1, 1]} : vector<3x1024xf32> to vector<3x512xf32>
    %c1_i32_12 = arith.constant 1 : i32
    %38 = vector.broadcast %c1_i32_12 : i32 to vector<1x512xi32>
    %39 = arith.cmpi sge, %0, %38 : vector<1x512xi32>
    %cst_13 = arith.constant 0.000000e+00 : f32
    %40 = vector.shape_cast %39 : vector<1x512xi1> to vector<1x512xi1>
    %41 = vector.broadcast %40 : vector<1x512xi1> to vector<3x512xi1>
    %42 = vector.broadcast %cst_13 : f32 to vector<3x512xf32>
    %43 = arith.select %41, %37, %42 : vector<3x512xi1>, vector<3x512xf32>
    %44 = vector.extract_strided_slice %6 {offsets = [0, 65], sizes = [3, 512], strides = [1, 1]} : vector<3x1024xf32> to vector<3x512xf32>
    %45 = vector.extract_strided_slice %6 {offsets = [0, 66], sizes = [3, 512], strides = [1, 1]} : vector<3x1024xf32> to vector<3x512xf32>
    %c31_i32_14 = arith.constant 31 : i32
    %46 = vector.broadcast %c31_i32_14 : i32 to vector<1x512xi32>
    %47 = arith.cmpi slt, %0, %46 : vector<1x512xi32>
    %cst_15 = arith.constant 0.000000e+00 : f32
    %48 = vector.shape_cast %47 : vector<1x512xi1> to vector<1x512xi1>
    %49 = vector.broadcast %48 : vector<1x512xi1> to vector<3x512xi1>
    %50 = vector.broadcast %cst_15 : f32 to vector<3x512xf32>
    %51 = arith.select %49, %45, %50 : vector<3x512xi1>, vector<3x512xf32>
    %52 = tpu.concatenate %13, %14, %21, %28, %29, %36, %43, %44, %51 in 0 : vector<3x512xf32>, vector<3x512xf32>, vector<3x512xf32>, vector<3x512xf32>, vector<3x512xf32>, vector<3x512xf32>, vector<3x512xf32>, vector<3x512xf32>, vector<3x512xf32> -> vector<27x512xf32>
    %c0_16 = arith.constant 0 : index
    %c0_17 = arith.constant 0 : index
    %53 = vector.load %arg5[%c0_16, %c0_17] : memref<16x27xf32, #tpu.memory_space<vmem>>, vector<16x27xf32>
    %cst_18 = arith.constant dense<0.000000e+00> : vector<16x512xf32>
    %54 = tpu.matmul %53, %52, %cst_18 {dimension_numbers = #tpu.dot_dimension_numbers<[1], [0], [0], [1], [0, 0, 1, 1], [], []>} : vector<16x27xf32>, vector<27x512xf32>, vector<16x512xf32> -> vector<16x512xf32>
    %c0_19 = arith.constant 0 : index
    %c0_20 = arith.constant 0 : index
    %55 = vector.load %arg6[%c0_19, %c0_20] : memref<16x1xf32, #tpu.memory_space<vmem>>, vector<16x1xf32>
    %56 = vector.broadcast %55 : vector<16x1xf32> to vector<16x512xf32>
    %57 = arith.addf %54, %56 : vector<16x512xf32>
    %cst_21 = arith.constant 0.000000e+00 : f32
    %58 = vector.broadcast %cst_21 : f32 to vector<16x512xf32>
    %59 = arith.cmpf ogt, %57, %58 : vector<16x512xf32>
    %cst_22 = arith.constant 1.000000e-01 : f32
    %60 = vector.broadcast %cst_22 : f32 to vector<16x512xf32>
    %61 = arith.mulf %60, %57 : vector<16x512xf32>
    %62 = arith.select %59, %57, %61 : vector<16x512xi1>, vector<16x512xf32>
    %c0_23 = arith.constant 0 : index
    %c0_24 = arith.constant 0 : index
    %c0_25 = arith.constant 0 : index
    %63 = vector.load %arg7[%c0_23, %c0_24, %c0_25] : memref<1x16x512xf32, #tpu.memory_space<vmem>>, vector<1x16x512xf32>
    %64 = vector.shape_cast %63 : vector<1x16x512xf32> to vector<16x512xf32>
    %65 = vector.shape_cast %62 : vector<16x512xf32> to vector<1x16x512xf32>
    tpu.vector_store %arg7[%c0_23, %c0_24, %c0_25], %65 {strides = array<i32>} : memref<1x16x512xf32, #tpu.memory_space<vmem>>, vector<1x16x512xf32>,
    return
  }
  func.func @transform_0(%arg0: i32, %arg1: i32) -> (i32, i32) {
    %c0_i32 = arith.constant 0 : i32
    %c0_i32_0 = arith.constant 0 : i32
    %c0_i32_1 = arith.constant 0 : i32
    return %c0_i32, %c0_i32_0 : i32, i32
  }
  func.func @transform_1(%arg0: i32, %arg1: i32) -> (i32, i32, i32) {
    %c0_i32 = arith.constant 0 : i32
    %c0_i32_0 = arith.constant 0 : i32
    return %arg0, %c0_i32, %arg1 : i32, i32, i32
  }
  func.func @transform_2(%arg0: i32, %arg1: i32) -> (i32, i32, i32) {
    %c1_i32 = arith.constant 1 : i32
    %0 = arith.addi %arg1, %c1_i32 : i32
    %c0_i32 = arith.constant 0 : i32
    %c0_i32_0 = arith.constant 0 : i32
    return %arg0, %c0_i32, %0 : i32, i32, i32
  }
  func.func @transform_3(%arg0: i32, %arg1: i32) -> (i32, i32) {
    %c0_i32 = arith.constant 0 : i32
    %c0_i32_0 = arith.constant 0 : i32
    %c0_i32_1 = arith.constant 0 : i32
    return %c0_i32, %c0_i32_0 : i32, i32
  }
  func.func @transform_4(%arg0: i32, %arg1: i32) -> (i32, i32) {
    %c0_i32 = arith.constant 0 : i32
    %c0_i32_0 = arith.constant 0 : i32
    %c0_i32_1 = arith.constant 0 : i32
    return %c0_i32, %c0_i32_0 : i32, i32
  }
  func.func @transform_5(%arg0: i32, %arg1: i32) -> (i32, i32, i32) {
    %c0_i32 = arith.constant 0 : i32
    %c0_i32_0 = arith.constant 0 : i32
    return %arg0, %c0_i32, %arg1 : i32, i32, i32
  }
}

</mosaic_0001>

<llo_original>
// kernel: tpu_custom_call.1
$region0: #{tpu_custom_call.1}
  #allocation0 [shape = 'u32[]', space=smem, size = 0x4, offset = 0x4, fixed_abs, tag = 'smem constant byte address 0x4 - core index']
  #allocation1 [shape = 'u32[144,128]{1,0:T(1,128)}', space=vmem, size = 0x12000, scoped, tag = 'internal scratch']
  %s0 = inlined_call_operand.vmem [shape: s32[1,512], index: 0, kind: input, shape index: {}]
  %s1 = inlined_call_operand.vmem [shape: bf16[2,3,1536], index: 1, kind: input, shape index: {}]
  %s2 = inlined_call_operand.vmem [shape: bf16[2,3,1536], index: 2, kind: input, shape index: {}]
  %s3 = inlined_call_operand.vmem [shape: f32[16,27], index: 3, kind: input, shape index: {}]
  %s4 = inlined_call_operand.vmem [shape: f32[16,1], index: 4, kind: input, shape index: {}]
  %s5 = inlined_call_operand.hbm [shape: f32[2,16,1024], index: 5, kind: output, shape index: {}]
  %s6 = sld [smem:[#allocation0]]
  $region53: #{tpu_custom_call.1} parent=0
    _
  %s8 = ssub.s32 1, %s6
  %s9 = scalar_select 0, %s8, %s6
  $region1: #{tpu_custom_call.1} parent=0
    #allocation2 [shape = 'u8[65536]{0}', space=vmem, size = 0x10000, scoped, tag = 'output window, operand 0']
    #allocation3 [shape = 's32[2]{0}', space=sflag, size = 0x8, scoped, tag = 'scoped memory for tpu_custom_call.1']
    %10 = vsyncpa [#allocation3], 0
    %s11 = scalar_lea.sflag [#allocation3], 1
    %12 = vsyncpa %s11, 0
    loop: start=0, step=1, limit=6
    $region2: #{tpu_custom_call.1} parent=1 // loop_pre_header
      _
    $region3: #{tpu_custom_call.1} parent=1 // loop_header
      %s14 = sphi 0, %s18
      %p15 = scmp.ge.s32.totalorder %s14, 6
      %s21 = sphi 0, %s33
      %s22 = sphi 0, %s29
      %s23 = sphi 0, %s21
      %s24 = sphi 0, %s22
      %s25 = sphi 0, %s23
      %s26 = sphi 0, %s24
      %s34 = sphi 0, %s34
      %s36 = sphi 0, %s34
      %s37 = sphi 0, %s36
      %s51 = sphi 0, %s37
      %s59 = sphi 0, %s61
      %s62 = sphi 0, %s59
      %s63 = sphi 0, %s62
      %s79 = sphi 0, %s63
      %s89 = sphi 0, %s91
      %s92 = sphi 0, %s89
      %s93 = sphi 0, %s92
      %s109 = sphi 0, %s93
      %s113 = sphi 0, %s113
      %s115 = sphi 0, %s113
      %s116 = sphi 0, %s115
      %s130 = sphi 0, %s116
      %s134 = sphi 0, %s134
      %s136 = sphi 0, %s134
      %s137 = sphi 0, %s136
      %s151 = sphi 0, %s137
      %s159 = sphi 0, %s161
      %s162 = sphi 0, %s159
      %s163 = sphi 0, %s162
      %s179 = sphi 0, %s163
    $region4: #{tpu_custom_call.1} parent=1 // loop_header_branch
      %17 = sbr.rel (%p15) target = $region8
    $region5: #{tpu_custom_call.1} parent=1 // loop_body
      %s19 = ssub.s32 %s14, 1
      %s20 = ssub.s32 %s14, 2
      %s27 = sadd.s32 1, %s22
      %p28 = scmp.ge.s32.totalorder %s27, 2
      %s29 = scalar_select %p28, 0, %s27
      %s30 = sadd.s32 1, %s21
      %s31 = scalar_select %p28, %s30, %s21
      %p32 = scmp.ge.s32.totalorder %s31, 2
      %s33 = scalar_select %p32, 0, %s31
      %s35 = sadd.s32 %s34, 1
      %p38 = scmp.eq.s32.totalorder %s14, 3
      %p39 = scmp.ne.s32.totalorder %s34, %s36
      %p40 = scmp.eq.s32.totalorder %s14, 0
      %p41 = por %p39, %p40
      %p42 = scmp.ne.s32.totalorder %s34, %s36
      %p43 = scmp.eq.s32.totalorder %s19, 3
      %p44 = por %p42, %p43
      %p45 = scmp.ne.s32.totalorder %s36, %s37
      %p46 = scmp.eq.s32.totalorder %s19, 0
      %p47 = por %p45, %p46
      %p48 = scmp.ne.s32.totalorder %s36, %s37
      %p49 = scmp.eq.s32.totalorder %s20, 3
      %p50 = por %p48, %p49
      %p52 = scmp.ne.s32.totalorder %s37, %s51
      %p53 = scmp.eq.s32.totalorder %s20, 0
      %p54 = por %p52, %p53
      %s55 = ssub.s32 %s21, %s33
      %s56 = ssub.s32 %s22, %s29
      %s57 = sor.u32 %s55, %s56
      %p58 = scmp.eq.s32.totalorder %s57, 0
      %s60 = sadd.s32 %s59, 1
      %s61 = scalar_select %p58, %s59, %s60
      %p64 = pneg %p58
      %p65 = scmp.eq.s32.totalorder %s14, 3
      %p66 = por %p64, %p65
      %p67 = scmp.ne.s32.totalorder %s59, %s62
      %p68 = scmp.eq.s32.totalorder %s14, 0
      %p69 = por %p67, %p68
      %p70 = scmp.ne.s32.totalorder %s59, %s62
      %p71 = scmp.eq.s32.totalorder %s19, 3
      %p72 = por %p70, %p71
      %p73 = scmp.ne.s32.totalorder %s62, %s63
      %p74 = scmp.eq.s32.totalorder %s19, 0
      %p75 = por %p73, %p74
      %p76 = scmp.ne.s32.totalorder %s62, %s63
      %p77 = scmp.eq.s32.totalorder %s20, 3
      %p78 = por %p76, %p77
      %p80 = scmp.ne.s32.totalorder %s63, %s79
      %p81 = scmp.eq.s32.totalorder %s20, 0
      %p82 = por %p80, %p81
      %s83 = sadd.s32 %s22, 1
      %s84 = sadd.s32 %s29, 1
      %s85 = ssub.s32 %s21, %s33
      %s86 = ssub.s32 %s83, %s84
      %s87 = sor.u32 %s85, %s86
      %p88 = scmp.eq.s32.totalorder %s87, 0
      %s90 = sadd.s32 %s89, 1
      %s91 = scalar_select %p88, %s89, %s90
      %p94 = pneg %p88
      %p95 = scmp.eq.s32.totalorder %s14, 3
      %p96 = por %p94, %p95
      %p97 = scmp.ne.s32.totalorder %s89, %s92
      %p98 = scmp.eq.s32.totalorder %s14, 0
      %p99 = por %p97, %p98
      %p100 = scmp.ne.s32.totalorder %s89, %s92
      %p101 = scmp.eq.s32.totalorder %s19, 3
      %p102 = por %p100, %p101
      %p103 = scmp.ne.s32.totalorder %s92, %s93
      %p104 = scmp.eq.s32.totalorder %s19, 0
      %p105 = por %p103, %p104
      %p106 = scmp.ne.s32.totalorder %s92, %s93
      %p107 = scmp.eq.s32.totalorder %s20, 3
      %p108 = por %p106, %p107
      %p110 = scmp.ne.s32.totalorder %s93, %s109
      %p111 = scmp.eq.s32.totalorder %s20, 0
      %p112 = por %p110, %p111
      %s114 = sadd.s32 %s113, 1
      %p117 = scmp.eq.s32.totalorder %s14, 3
      %p118 = scmp.ne.s32.totalorder %s113, %s115
      %p119 = scmp.eq.s32.totalorder %s14, 0
      %p120 = por %p118, %p119
      %p121 = scmp.ne.s32.totalorder %s113, %s115
      %p122 = scmp.eq.s32.totalorder %s19, 3
      %p123 = por %p121, %p122
      %p124 = scmp.ne.s32.totalorder %s115, %s116
      %p125 = scmp.eq.s32.totalorder %s19, 0
      %p126 = por %p124, %p125
      %p127 = scmp.ne.s32.totalorder %s115, %s116
      %p128 = scmp.eq.s32.totalorder %s20, 3
      %p129 = por %p127, %p128
      %p131 = scmp.ne.s32.totalorder %s116, %s130
      %p132 = scmp.eq.s32.totalorder %s20, 0
      %p133 = por %p131, %p132
      %s135 = sadd.s32 %s134, 1
      %p138 = scmp.eq.s32.totalorder %s14, 3
      %p139 = scmp.ne.s32.totalorder %s134, %s136
      %p140 = scmp.eq.s32.totalorder %s14, 0
      %p141 = por %p139, %p140
      %p142 = scmp.ne.s32.totalorder %s134, %s136
      %p143 = scmp.eq.s32.totalorder %s19, 3
      %p144 = por %p142, %p143
      %p145 = scmp.ne.s32.totalorder %s136, %s137
      %p146 = scmp.eq.s32.totalorder %s19, 0
      %p147 = por %p145, %p146
      %p148 = scmp.ne.s32.totalorder %s136, %s137
      %p149 = scmp.eq.s32.totalorder %s20, 3
      %p150 = por %p148, %p149
      %p152 = scmp.ne.s32.totalorder %s137, %s151
      %p153 = scmp.eq.s32.totalorder %s20, 0
      %p154 = por %p152, %p153
      %s155 = ssub.s32 %s21, %s33
      %s156 = ssub.s32 %s22, %s29
      %s157 = sor.u32 %s155, %s156
      %p158 = scmp.eq.s32.totalorder %s157, 0
      %s160 = sadd.s32 %s159, 1
      %s161 = scalar_select %p158, %s159, %s160
      %p164 = pneg %p158
      %p165 = scmp.eq.s32.totalorder %s14, 3
      %p166 = por %p164, %p165
      %p167 = scmp.ne.s32.totalorder %s159, %s162
      %p168 = scmp.eq.s32.totalorder %s14, 0
      %p169 = por %p167, %p168
      %p170 = scmp.ne.s32.totalorder %s159, %s162
      %p171 = scmp.eq.s32.totalorder %s19, 3
      %p172 = por %p170, %p171
      %p173 = scmp.ne.s32.totalorder %s162, %s163
      %p174 = scmp.eq.s32.totalorder %s19, 0
      %p175 = por %p173, %p174
      %p176 = scmp.ne.s32.totalorder %s162, %s163
      %p177 = scmp.eq.s32.totalorder %s20, 3
      %p178 = por %p176, %p177
      %p180 = scmp.ne.s32.totalorder %s163, %s179
      %p181 = scmp.eq.s32.totalorder %s20, 0
      %p182 = por %p180, %p181
      %p183 = scmp.le.s32.totalorder 1, %s14
      %p184 = scmp.lt.s32.totalorder %s14, 5
      %p185 = pnand %p183, %p184
      %p186 = pneg %p185
      // Predicated region
      $region9: #{tpu_custom_call.1} parent=5 // pred_check
        _
      $region10: #{tpu_custom_call.1} parent=5 // pred_check_branch
        %188 = sbr.rel (%p185) target = $region12
      $region11: #{tpu_custom_call.1} parent=5 // pred_region
        %s189 = ssub.s32 %s14, 1
        // Predicated region
        $region13: #{tpu_custom_call.1} parent=11 // pred_check
          %p190 = pneg %p47
        $region14: #{tpu_custom_call.1} parent=11 // pred_check_branch
          %192 = sbr.rel (%p190) target = $region16
        $region15: #{tpu_custom_call.1} parent=11 // pred_region
          _
        $region16: #{tpu_custom_call.1} parent=11 // pred_fallthru
          _
        // Predicated region
        $region17: #{tpu_custom_call.1} parent=11 // pred_check
          %p193 = pneg %p126
        $region18: #{tpu_custom_call.1} parent=11 // pred_check_branch
          %195 = sbr.rel (%p193) target = $region20
        $region19: #{tpu_custom_call.1} parent=11 // pred_region
          _
        $region20: #{tpu_custom_call.1} parent=11 // pred_fallthru
          _
        // Predicated region
        $region21: #{tpu_custom_call.1} parent=11 // pred_check
          %p196 = pneg %p147
        $region22: #{tpu_custom_call.1} parent=11 // pred_check_branch
          %198 = sbr.rel (%p196) target = $region24
        $region23: #{tpu_custom_call.1} parent=11 // pred_region
          _
        $region24: #{tpu_custom_call.1} parent=11 // pred_fallthru
          _
      $region12: #{tpu_custom_call.1} parent=5 // pred_fallthru
        _
      %p199 = scmp.lt.s32.totalorder %s14, 4
      // Predicated region
      $region25: #{tpu_custom_call.1} parent=5 // pred_check
        %p200 = pneg %p199
      $region26: #{tpu_custom_call.1} parent=5 // pred_check_branch
        %202 = sbr.rel (%p200) target = $region28
      $region27: #{tpu_custom_call.1} parent=5 // pred_region
        // Predicated region
        $region29: #{tpu_custom_call.1} parent=27 // pred_check
          %p203 = pneg %p69
        $region30: #{tpu_custom_call.1} parent=27 // pred_check_branch
          %205 = sbr.rel (%p203) target = $region32
        $region31: #{tpu_custom_call.1} parent=27 // pred_region
          %s206 = smul.u32 4, %s22
          %p207 = scmp.lt.s32.totalorder %s21, 1
          %s208 = scalar_select %p207, %s21, 1
          %p209 = scmp.lt.s32.totalorder %s206, 11
          %s210 = scalar_select %p209, %s206, 11
          %s211 = smul.addr %s208, 12
          %s212 = sadd.s32 %s210, %s211
          %s213 = smul.addr %s212, 2
          %s214 = scalar_lea.vmem %s1, %s213
          %s215 = smul.u32 4, %s22
        $region32: #{tpu_custom_call.1} parent=27 // pred_fallthru
          _
        // Predicated region
        $region33: #{tpu_custom_call.1} parent=27 // pred_check
          %p216 = pneg %p99
        $region34: #{tpu_custom_call.1} parent=27 // pred_check_branch
          %218 = sbr.rel (%p216) target = $region36
        $region35: #{tpu_custom_call.1} parent=27 // pred_region
          %s219 = sadd.s32 %s22, 1
          %s220 = smul.u32 4, %s219
          %p221 = scmp.lt.s32.totalorder %s21, 1
          %s222 = scalar_select %p221, %s21, 1
          %p223 = scmp.lt.s32.totalorder %s220, 11
          %s224 = scalar_select %p223, %s220, 11
          %s225 = smul.addr %s222, 12
          %s226 = sadd.s32 %s224, %s225
          %s227 = smul.addr %s226, 2
          %s228 = scalar_lea.vmem %s2, %s227
          %s229 = sadd.s32 %s22, 1
          %s230 = smul.u32 4, %s229
        $region36: #{tpu_custom_call.1} parent=27 // pred_fallthru
          _
      $region28: #{tpu_custom_call.1} parent=5 // pred_fallthru
        _
      %p231 = scmp.le.s32.totalorder 1, %s14
      %p232 = scmp.lt.s32.totalorder %s14, 5
      %p233 = pnand %p231, %p232
      %p234 = pneg %p233
      // Predicated region
      $region37: #{tpu_custom_call.1} parent=5 // pred_check
        _
      $region38: #{tpu_custom_call.1} parent=5 // pred_check_branch
        %236 = sbr.rel (%p233) target = $region40
      $region39: #{tpu_custom_call.1} parent=5 // pred_region
        %s237 = ssub.s32 %s14, 1
        %p238 = pneg %p47
        %p239 = pneg %p44
        %s240 = smul.u32 4, %s24
        %p241 = scmp.lt.s32.totalorder %s23, 1
        %s242 = scalar_select %p241, %s23, 1
        %p243 = scmp.lt.s32.totalorder %s240, 11
        %s244 = scalar_select %p243, %s240, 11
        %s245 = smul.addr %s242, 12
        %s246 = sadd.s32 %s244, %s245
        %s247 = smul.addr %s246, 2
        %s248 = scalar_lea.vmem %s1, %s247
        %p249 = pneg %p75
        %p250 = pneg %p72
        %s251 = sadd.s32 %s24, 1
        %s252 = smul.u32 4, %s251
        %p253 = scmp.lt.s32.totalorder %s23, 1
        %s254 = scalar_select %p253, %s23, 1
        %p255 = scmp.lt.s32.totalorder %s252, 11
        %s256 = scalar_select %p255, %s252, 11
        %s257 = smul.addr %s254, 12
        %s258 = sadd.s32 %s256, %s257
        %s259 = smul.addr %s258, 2
        %s260 = scalar_lea.vmem %s2, %s259
        %p261 = pneg %p105
        %p262 = pneg %p102
        %p263 = pneg %p126
        %p264 = pneg %p123
        %p265 = pneg %p147
        %p266 = pneg %p144
        %p267 = pneg %p175
        %p268 = pneg %p172
        %s269 = sand.u32 %s162, 1
        %s270 = scalar_lea.sflag [#allocation3], %s269
        %s271 = sand.u32 %s162, 1
        %s272 = smul.addr %s271, 64
        %s273 = scalar_lea.vmem [#allocation2], %s272
        %s274 = smul.u32 4, %s24
        %p275 = scmp.lt.s32.totalorder %s23, 1
        %s276 = scalar_select %p275, %s23, 1
        %p277 = scmp.lt.s32.totalorder %s274, 11
        %s278 = scalar_select %p277, %s274, 11
        %s279 = smul.addr %s276, 12
        %s280 = sadd.s32 %s278, %s279
        %s281 = smul.addr %s280, 2
        %s282 = scalar_lea.vmem %s1, %s281
        %s283 = smul.u32 4, %s24
        %s284 = sadd.s32 %s24, 1
        %s285 = smul.u32 4, %s284
        %p286 = scmp.lt.s32.totalorder %s23, 1
        %s287 = scalar_select %p286, %s23, 1
        %p288 = scmp.lt.s32.totalorder %s285, 11
        %s289 = scalar_select %p288, %s285, 11
        %s290 = smul.addr %s287, 12
        %s291 = sadd.s32 %s289, %s290
        %s292 = smul.addr %s291, 2
        %s293 = scalar_lea.vmem %s2, %s292
        %s294 = sadd.s32 %s24, 1
        %s295 = smul.u32 4, %s294
        %s296 = smul.u32 4, %s24
        %v297 = vld [vmem:[%s0] sm:$0xf]
        %v298 = vld [vmem:[%s282] sm:$0xff]
        %v299 = vld [vmem:[%s293] sm:$0xff]
        %v301 = vcombine.high %v298, %v298
        %v303 = vunpack.c.l.s4 1983009808
        %v304 = vunpack.c.0.s8 %v303
        %v305 = vlaneseq
        %v306 = vshrl.u32 %v305, 7
        %v307 = vsub.s32 %v304, %v306
        %v308 = vrot.slane %v298, %v307
        %v310 = vunpack.c.l.s4 1983009808
        %v311 = vunpack.c.0.s8 %v310
        %v312 = vlaneseq
        %v313 = vshrl.u32 %v312, 7
        %v314 = vsub.s32 %v311, %v313
        %v315 = vrot.slane %v301, %v314
        %v316 = vcombine.high %v308, %v308
        %v317 = vcombine.high %v315, %v315
        %v324 = vunpack.c.l.s4 1983009808
        %v325 = vunpack.c.0.s8 %v324
        %v326 = vlaneseq
        %v327 = vshrl.u32 %v326, 7
        %v328 = vsub.s32 %v325, %v327
        %v329 = vrot.slane %v299, %v328
        %v331 = vunpack.c.l.bf16 %v308
        %v332 = vunpack.c.l.bf16 %v316
        %v333 = vunpack.c.l.bf16 %v315
        %v334 = vunpack.c.l.bf16 %v317
        %v335 = vunpack.c.l.bf16 %v329
        %vm336 = vcmp.ge.s32.totalorder %v297, 1
        %v337 = vsel %vm336, 1, 0
        %v338 = vlaneseq
        %v339 = vshrl.u32 %v338, 7
        %v340 = vsub.s32 0, %v339
        %v341 = vrot.slane %v337, %v340
        %v342 = vlaneseq
        %v343 = vshrl.u32 %v342, 7
        %v344 = vsub.s32 1, %v343
        %v345 = vrot.slane %v337, %v344
        %v346 = vlaneseq
        %v347 = vshrl.u32 %v346, 7
        %v348 = vsub.s32 2, %v347
        %v349 = vrot.slane %v337, %v348
        %v350 = vlaneseq
        %v351 = vshrl.u32 %v350, 7
        %v352 = vsub.s32 3, %v351
        %v353 = vrot.slane %v337, %v352
        %vm354 = vcmp.eq.s32.totalorder %v341, 1
        %vm355 = vcmp.eq.s32.totalorder %v345, 1
        %vm356 = vcmp.eq.s32.totalorder %v349, 1
        %vm357 = vcmp.eq.s32.totalorder %v353, 1
        %v358 = vsel %vm354, %v331, 0.0
        %v359 = vsel %vm355, %v332, 0.0
        %v360 = vsel %vm356, %v333, 0.0
        %v361 = vsel %vm357, %v334, 0.0
        %vm362 = vcmp.lt.s32.totalorder %v297, 31
        %v363 = vsel %vm362, 1, 0
        %v364 = vlaneseq
        %v365 = vshrl.u32 %v364, 7
        %v366 = vsub.s32 0, %v365
        %v367 = vrot.slane %v363, %v366
        %v368 = vlaneseq
        %v369 = vshrl.u32 %v368, 7
        %v370 = vsub.s32 1, %v369
        %v371 = vrot.slane %v363, %v370
        %v372 = vlaneseq
        %v373 = vshrl.u32 %v372, 7
        %v374 = vsub.s32 2, %v373
        %v375 = vrot.slane %v363, %v374
        %v376 = vlaneseq
        %v377 = vshrl.u32 %v376, 7
        %v378 = vsub.s32 3, %v377
        %v379 = vrot.slane %v363, %v378
        %vm380 = vcmp.eq.s32.totalorder %v367, 1
        %vm381 = vcmp.eq.s32.totalorder %v371, 1
        %vm382 = vcmp.eq.s32.totalorder %v375, 1
        %vm383 = vcmp.eq.s32.totalorder %v379, 1
        %389 = vrot.lane.b32.xlu0 %v331, 126
        %v390 = vpop.permute.xlu0 %389
        %391 = vrot.lane.b32.xlu0 %v332, 126
        %v392 = vpop.permute.xlu0 %391
        %393 = vrot.lane.b32.xlu0 %v333, 126
        %v394 = vpop.permute.xlu0 %393
        %395 = vrot.lane.b32.xlu0 %v334, 126
        %v396 = vpop.permute.xlu0 %395
        %397 = vrot.lane.b32.xlu0 %v335, 126
        %v398 = vpop.permute.xlu0 %397
        %vm399 = vcmask 1031168
        %v400 = vsel %vm399, %v390, %v392
        %v401 = vsel %vm399, %v392, %v394
        %v402 = vsel %vm399, %v394, %v396
        %v403 = vsel %vm399, %v396, %v398
        %v408 = vsel %vm380, %v400, 0.0
        %v409 = vsel %vm381, %v401, 0.0
        %v410 = vsel %vm382, %v402, 0.0
        %v411 = vsel %vm383, %v403, 0.0
        %412 = vrot.lane.b32.xlu0 %v331, 96
        %v413 = vpop.permute.xlu0 %412
        %414 = vrot.lane.b32.xlu0 %v332, 96
        %v415 = vpop.permute.xlu0 %414
        %416 = vrot.lane.b32.xlu0 %v333, 96
        %v417 = vpop.permute.xlu0 %416
        %418 = vrot.lane.b32.xlu0 %v334, 96
        %v419 = vpop.permute.xlu0 %418
        %420 = vrot.lane.b32.xlu0 %v335, 96
        %v421 = vpop.permute.xlu0 %420
        %vm422 = vcmask 785408
        %v423 = vsel %vm422, %v413, %v415
        %v424 = vsel %vm422, %v415, %v417
        %v425 = vsel %vm422, %v417, %v419
        %v426 = vsel %vm422, %v419, %v421
        %v431 = vsel %vm354, %v423, 0.0
        %v432 = vsel %vm355, %v424, 0.0
        %v433 = vsel %vm356, %v425, 0.0
        %v434 = vsel %vm357, %v426, 0.0
        %435 = vrot.lane.b32.xlu0 %v331, 94
        %v436 = vpop.permute.xlu0 %435
        %437 = vrot.lane.b32.xlu0 %v332, 94
        %v438 = vpop.permute.xlu0 %437
        %439 = vrot.lane.b32.xlu0 %v333, 94
        %v440 = vpop.permute.xlu0 %439
        %441 = vrot.lane.b32.xlu0 %v334, 94
        %v442 = vpop.permute.xlu0 %441
        %443 = vrot.lane.b32.xlu0 %v335, 94
        %v444 = vpop.permute.xlu0 %443
        %vm445 = vcmask 769024
        %v446 = vsel %vm445, %v436, %v438
        %v447 = vsel %vm445, %v438, %v440
        %v448 = vsel %vm445, %v440, %v442
        %v449 = vsel %vm445, %v442, %v444
        %v454 = vsel %vm380, %v446, 0.0
        %v455 = vsel %vm381, %v447, 0.0
        %v456 = vsel %vm382, %v448, 0.0
        %v457 = vsel %vm383, %v449, 0.0
        %458 = vrot.lane.b32.xlu0 %v331, 64
        %v459 = vpop.permute.xlu0 %458
        %460 = vrot.lane.b32.xlu0 %v332, 64
        %v461 = vpop.permute.xlu0 %460
        %462 = vrot.lane.b32.xlu0 %v333, 64
        %v463 = vpop.permute.xlu0 %462
        %464 = vrot.lane.b32.xlu0 %v334, 64
        %v465 = vpop.permute.xlu0 %464
        %466 = vrot.lane.b32.xlu0 %v335, 64
        %v467 = vpop.permute.xlu0 %466
        %vm468 = vcmask 523264
        %v469 = vsel %vm468, %v459, %v461
        %v470 = vsel %vm468, %v461, %v463
        %v471 = vsel %vm468, %v463, %v465
        %v472 = vsel %vm468, %v465, %v467
        %v477 = vsel %vm354, %v469, 0.0
        %v478 = vsel %vm355, %v470, 0.0
        %v479 = vsel %vm356, %v471, 0.0
        %v480 = vsel %vm357, %v472, 0.0
        %481 = vrot.lane.b32.xlu0 %v331, 62
        %v482 = vpop.permute.xlu0 %481
        %483 = vrot.lane.b32.xlu0 %v332, 62
        %v484 = vpop.permute.xlu0 %483
        %485 = vrot.lane.b32.xlu0 %v333, 62
        %v486 = vpop.permute.xlu0 %485
        %487 = vrot.lane.b32.xlu0 %v334, 62
        %v488 = vpop.permute.xlu0 %487
        %489 = vrot.lane.b32.xlu0 %v335, 62
        %v490 = vpop.permute.xlu0 %489
        %vm491 = vcmask 506880
        %v492 = vsel %vm491, %v482, %v484
        %v493 = vsel %vm491, %v484, %v486
        %v494 = vsel %vm491, %v486, %v488
        %v495 = vsel %vm491, %v488, %v490
        %v500 = vsel %vm380, %v492, 0.0
        %v501 = vsel %vm381, %v493, 0.0
        %v502 = vsel %vm382, %v494, 0.0
        %v503 = vsel %vm383, %v495, 0.0
        %v504 = vrot.slane %v331, 5
        %v505 = vrot.slane %v332, 5
        %v506 = vrot.slane %v333, 5
        %v507 = vrot.slane %v334, 5
        %v508 = vrot.slane %v335, 5
        %509 = vrot.lane.b32.xlu0 %v504, 127
        %v510 = vpop.permute.xlu0 %509
        %511 = vrot.lane.b32.xlu0 %v505, 127
        %v512 = vpop.permute.xlu0 %511
        %513 = vrot.lane.b32.xlu0 %v506, 127
        %v514 = vpop.permute.xlu0 %513
        %515 = vrot.lane.b32.xlu0 %v507, 127
        %v516 = vpop.permute.xlu0 %515
        %517 = vrot.lane.b32.xlu0 %v508, 127
        %v518 = vpop.permute.xlu0 %517
        %vm519 = vcmask 1039360
        %v520 = vsel %vm519, %v510, %v512
        %v521 = vsel %vm519, %v512, %v514
        %v522 = vsel %vm519, %v514, %v516
        %v523 = vsel %vm519, %v516, %v518
        %v532 = vrot.slane %v408, 2
        %v533 = vrot.slane %v409, 2
        %v534 = vrot.slane %v410, 2
        %v535 = vrot.slane %v411, 2
        %v544 = vrot.slane %v431, 7
        %v545 = vrot.slane %v432, 7
        %v546 = vrot.slane %v433, 7
        %v547 = vrot.slane %v434, 7
        %v552 = vrot.slane %v331, 4
        %v553 = vrot.slane %v332, 4
        %v554 = vrot.slane %v333, 4
        %v555 = vrot.slane %v334, 4
        %v556 = vrot.slane %v335, 4
        %557 = vrot.lane.b32.xlu0 %v552, 95
        %v558 = vpop.permute.xlu0 %557
        %559 = vrot.lane.b32.xlu0 %v553, 95
        %v560 = vpop.permute.xlu0 %559
        %561 = vrot.lane.b32.xlu0 %v554, 95
        %v562 = vpop.permute.xlu0 %561
        %563 = vrot.lane.b32.xlu0 %v555, 95
        %v564 = vpop.permute.xlu0 %563
        %565 = vrot.lane.b32.xlu0 %v556, 95
        %v566 = vpop.permute.xlu0 %565
        %vm567 = vcmask 777216
        %v568 = vsel %vm567, %v558, %v560
        %v569 = vsel %vm567, %v560, %v562
        %v570 = vsel %vm567, %v562, %v564
        %v571 = vsel %vm567, %v564, %v566
        %v580 = vrot.slane %v454, 1
        %v581 = vrot.slane %v455, 1
        %v582 = vrot.slane %v456, 1
        %v583 = vrot.slane %v457, 1
        %v592 = vrot.slane %v477, 6
        %v593 = vrot.slane %v478, 6
        %v594 = vrot.slane %v479, 6
        %v595 = vrot.slane %v480, 6
        %v600 = vrot.slane %v331, 3
        %v601 = vrot.slane %v332, 3
        %v602 = vrot.slane %v333, 3
        %v603 = vrot.slane %v334, 3
        %v604 = vrot.slane %v335, 3
        %605 = vrot.lane.b32.xlu0 %v600, 63
        %v606 = vpop.permute.xlu0 %605
        %607 = vrot.lane.b32.xlu0 %v601, 63
        %v608 = vpop.permute.xlu0 %607
        %609 = vrot.lane.b32.xlu0 %v602, 63
        %v610 = vpop.permute.xlu0 %609
        %611 = vrot.lane.b32.xlu0 %v603, 63
        %v612 = vpop.permute.xlu0 %611
        %613 = vrot.lane.b32.xlu0 %v604, 63
        %v614 = vpop.permute.xlu0 %613
        %vm615 = vcmask 515072
        %v616 = vsel %vm615, %v606, %v608
        %v617 = vsel %vm615, %v608, %v610
        %v618 = vsel %vm615, %v610, %v612
        %v619 = vsel %vm615, %v612, %v614
        %vm624 = vcmask 1042432
        %v625 = vsel %vm624, %v358, %v520
        %v626 = vsel %vm624, %v359, %v521
        %v627 = vsel %vm624, %v360, %v522
        %v628 = vsel %vm624, %v361, %v523
        %vm629 = vcmask 1045504
        %v630 = vsel %vm629, %v625, %v532
        %v631 = vsel %vm629, %v626, %v533
        %v632 = vsel %vm629, %v627, %v534
        %v633 = vsel %vm629, %v628, %v535
        %vm634 = vcmask 1040384
        %v635 = vsel %vm634, %v532, %v544
        %v636 = vsel %vm634, %v533, %v545
        %v637 = vsel %vm634, %v534, %v546
        %v638 = vsel %vm634, %v535, %v547
        %vm639 = vcmask 1043456
        %v640 = vsel %vm639, %v635, %v568
        %v641 = vsel %vm639, %v636, %v569
        %v642 = vsel %vm639, %v637, %v570
        %v643 = vsel %vm639, %v638, %v571
        %vm644 = vcmask 1046528
        %v645 = vsel %vm644, %v640, %v580
        %v646 = vsel %vm644, %v641, %v581
        %v647 = vsel %vm644, %v642, %v582
        %v648 = vsel %vm644, %v643, %v583
        %vm649 = vcmask 1041408
        %v650 = vsel %vm649, %v580, %v592
        %v651 = vsel %vm649, %v581, %v593
        %v652 = vsel %vm649, %v582, %v594
        %v653 = vsel %vm649, %v583, %v595
        %vm654 = vcmask 1044480
        %v655 = vsel %vm654, %v650, %v616
        %v656 = vsel %vm654, %v651, %v617
        %v657 = vsel %vm654, %v652, %v618
        %v658 = vsel %vm654, %v653, %v619
        %v659 = vld [vmem:[%s3] sm:$0xff]
        %v660 = vld [vmem:[%s3 + $0x8] sm:$0xff]
        %v661 = vld [vmem:[%s4] sm:$0xff]
        %v662 = vld [vmem:[%s4 + $0x8] sm:$0xff]
        %664 = vset.pattern.permute.xlu0 0
        %665 = vperm.xlu0 %664, %v661
        %v666 = vpop.permute.xlu0 %665
        %669 = vset.pattern.permute.xlu0 0
        %670 = vperm.xlu0 %669, %v662
        %v671 = vpop.permute.xlu0 %670
        %vm673 = vcmask 220160
        %v675 = vsel %vm673, %v659, 0
        %v678 = vsel %vm673, %v660, 0
        %v681 = vsel %vm624, %v500, 0
        %v684 = vsel %vm624, %v501, 0
        %v687 = vsel %vm624, %v502, 0
        %v690 = vsel %vm624, %v503, 0
        %692 = vmatprep.subr.mxu0 0.0
        %693 = vmatpush1.msra.mxu0 0.0
        %694 = vmatprep.subr.mxu0 0.0
        %695 = vmatpush1.msra.mxu0 0.0
        %696 = vmatprep.subr.mxu0 0.0
        %697 = vmatpush1.msra.mxu0 0.0
        %698 = vmatprep.subr.mxu0 0.0
        %699 = vmatpush1.msra.mxu0 0.0
        %700 = vmatprep.subr.mxu0 0.0
        %701 = vmatpush1.msra.mxu0 0.0
        %702 = vmatprep.subr.mxu0 0.0
        %703 = vmatpush1.msra.mxu0 0.0
        %704 = vmatprep.subr.mxu0 0.0
        %705 = vmatpush1.msra.mxu0 0.0
        %706 = vmatprep.subr.mxu0 0.0
        %707 = vmatpush1.msra.mxu0 0.0
        %708 = vmatprep.subr.mxu0 0.0
        %709 = vmatpush1.msra.mxu0 0.0
        %710 = vmatprep.subr.mxu0 0.0
        %711 = vmatpush1.msra.mxu0 0.0
        %712 = vmatprep.subr.mxu0 0.0
        %713 = vmatpush1.msra.mxu0 0.0
        %714 = vmatprep.subr.mxu0 0.0
        %715 = vmatpush1.msra.mxu0 0.0
        %716 = vmatprep.subr.mxu0 %v684
        %717 = vmatpush1.msra.mxu0 %v681
        %718 = vmatprep.subr.mxu0 %v656
        %719 = vmatpush1.msra.mxu0 %v655
        %720 = vmatprep.subr.mxu0 %v646
        %721 = vmatpush1.msra.mxu0 %v645
        %722 = vmatprep.subr.mxu0 %v631
        %723 = vmatpush1.msra.mxu0 %v630
        %724 = vmatprep.subr.mxu0 0.0
        %725 = vmatpush2.msra.mxu0 0.0
        %726 = vmatprep.subr.mxu0 0.0
        %727 = vmatpush2.msra.mxu0 0.0
        %728 = vmatprep.subr.mxu0 0.0
        %729 = vmatpush2.msra.mxu0 0.0
        %730 = vmatprep.subr.mxu0 0.0
        %731 = vmatpush2.msra.mxu0 0.0
        %732 = vmatprep.subr.mxu0 0.0
        %733 = vmatpush2.msra.mxu0 0.0
        %734 = vmatprep.subr.mxu0 0.0
        %735 = vmatpush2.msra.mxu0 0.0
        %736 = vmatprep.subr.mxu0 0.0
        %737 = vmatpush2.msra.mxu0 0.0
        %738 = vmatprep.subr.mxu0 0.0
        %739 = vmatpush2.msra.mxu0 0.0
        %740 = vmatprep.subr.mxu0 0.0
        %741 = vmatpush2.msra.mxu0 0.0
        %742 = vmatprep.subr.mxu0 0.0
        %743 = vmatpush2.msra.mxu0 0.0
        %744 = vmatprep.subr.mxu0 0.0
        %745 = vmatpush2.msra.mxu0 0.0
        %746 = vmatprep.subr.mxu0 0.0
        %747 = vmatpush2.msra.mxu0 0.0
        %748 = vmatprep.subr.mxu0 0.0
        %749 = vmatpush2.msra.mxu0 0.0
        %750 = vmatprep.subr.mxu0 0.0
        %751 = vmatpush2.msra.mxu0 0.0
        %752 = vmatprep.subr.mxu0 0.0
        %753 = vmatpush2.msra.mxu0 0.0
        %754 = vmatprep.subr.mxu0 0.0
        %755 = vmatpush2.msra.mxu0 0.0
        %756 = vmatprep.mubr.f32.mxu0 0.0
        %757 = vmatmul.mubr.f32.gmra.mxu0 %v675
        %v758 = vpop.f32.mrf.mxu0
        %v759 = vadd.f32 %v666, %v758
        %v760 = vpop.f32.mrf.mxu0
        %v761 = vadd.f32 %v666, %v760
        %762 = vmatprep.mubr.f32.mxu0 0.0
        %763 = vmatmul.mubr.f32.gmra.mxu0 %v678
        %v764 = vpop.f32.mrf.mxu0
        %v765 = vadd.f32 %v671, %v764
        %v766 = vpop.f32.mrf.mxu0
        %v767 = vadd.f32 %v671, %v766
        %768 = vdwg.mxu0
        %769 = vmatprep.subr.mxu0 0.0
        %770 = vmatpush1.msra.mxu0 0.0
        %771 = vmatprep.subr.mxu0 0.0
        %772 = vmatpush1.msra.mxu0 0.0
        %773 = vmatprep.subr.mxu0 0.0
        %774 = vmatpush1.msra.mxu0 0.0
        %775 = vmatprep.subr.mxu0 0.0
        %776 = vmatpush1.msra.mxu0 0.0
        %777 = vmatprep.subr.mxu0 0.0
        %778 = vmatpush1.msra.mxu0 0.0
        %779 = vmatprep.subr.mxu0 0.0
        %780 = vmatpush1.msra.mxu0 0.0
        %781 = vmatprep.subr.mxu0 0.0
        %782 = vmatpush1.msra.mxu0 0.0
        %783 = vmatprep.subr.mxu0 0.0
        %784 = vmatpush1.msra.mxu0 0.0
        %785 = vmatprep.subr.mxu0 0.0
        %786 = vmatpush1.msra.mxu0 0.0
        %787 = vmatprep.subr.mxu0 0.0
        %788 = vmatpush1.msra.mxu0 0.0
        %789 = vmatprep.subr.mxu0 0.0
        %790 = vmatpush1.msra.mxu0 0.0
        %791 = vmatprep.subr.mxu0 0.0
        %792 = vmatpush1.msra.mxu0 0.0
        %793 = vmatprep.subr.mxu0 %v690
        %794 = vmatpush1.msra.mxu0 %v687
        %795 = vmatprep.subr.mxu0 %v658
        %796 = vmatpush1.msra.mxu0 %v657
        %797 = vmatprep.subr.mxu0 %v648
        %798 = vmatpush1.msra.mxu0 %v647
        %799 = vmatprep.subr.mxu0 %v633
        %800 = vmatpush1.msra.mxu0 %v632
        %801 = vmatprep.subr.mxu0 0.0
        %802 = vmatpush2.msra.mxu0 0.0
        %803 = vmatprep.subr.mxu0 0.0
        %804 = vmatpush2.msra.mxu0 0.0
        %805 = vmatprep.subr.mxu0 0.0
        %806 = vmatpush2.msra.mxu0 0.0
        %807 = vmatprep.subr.mxu0 0.0
        %808 = vmatpush2.msra.mxu0 0.0
        %809 = vmatprep.subr.mxu0 0.0
        %810 = vmatpush2.msra.mxu0 0.0
        %811 = vmatprep.subr.mxu0 0.0
        %812 = vmatpush2.msra.mxu0 0.0
        %813 = vmatprep.subr.mxu0 0.0
        %814 = vmatpush2.msra.mxu0 0.0
        %815 = vmatprep.subr.mxu0 0.0
        %816 = vmatpush2.msra.mxu0 0.0
        %817 = vmatprep.subr.mxu0 0.0
        %818 = vmatpush2.msra.mxu0 0.0
        %819 = vmatprep.subr.mxu0 0.0
        %820 = vmatpush2.msra.mxu0 0.0
        %821 = vmatprep.subr.mxu0 0.0
        %822 = vmatpush2.msra.mxu0 0.0
        %823 = vmatprep.subr.mxu0 0.0
        %824 = vmatpush2.msra.mxu0 0.0
        %825 = vmatprep.subr.mxu0 0.0
        %826 = vmatpush2.msra.mxu0 0.0
        %827 = vmatprep.subr.mxu0 0.0
        %828 = vmatpush2.msra.mxu0 0.0
        %829 = vmatprep.subr.mxu0 0.0
        %830 = vmatpush2.msra.mxu0 0.0
        %831 = vmatprep.subr.mxu0 0.0
        %832 = vmatpush2.msra.mxu0 0.0
        %833 = vmatprep.mubr.f32.mxu0 0.0
        %834 = vmatmul.mubr.f32.gmra.mxu0 %v675
        %v835 = vpop.f32.mrf.mxu0
        %v836 = vadd.f32 %v666, %v835
        %v837 = vpop.f32.mrf.mxu0
        %v838 = vadd.f32 %v666, %v837
        %839 = vmatprep.mubr.f32.mxu0 0.0
        %840 = vmatmul.mubr.f32.gmra.mxu0 %v678
        %v841 = vpop.f32.mrf.mxu0
        %v842 = vadd.f32 %v671, %v841
        %v843 = vpop.f32.mrf.mxu0
        %v844 = vadd.f32 %v671, %v843
        %845 = vdwg.mxu0
        %vm846 = vcmp.gt.f32.partialorder %v759, 0.0
        %vm847 = vcmp.gt.f32.partialorder %v761, 0.0
        %vm848 = vcmp.gt.f32.partialorder %v836, 0.0
        %vm849 = vcmp.gt.f32.partialorder %v838, 0.0
        %vm850 = vcmp.gt.f32.partialorder %v765, 0.0
        %vm851 = vcmp.gt.f32.partialorder %v767, 0.0
        %vm852 = vcmp.gt.f32.partialorder %v842, 0.0
        %vm853 = vcmp.gt.f32.partialorder %v844, 0.0
        %v854 = vmul.f32 %v759, 0.1
        %v855 = vmul.f32 %v761, 0.1
        %v856 = vmul.f32 %v836, 0.1
        %v857 = vmul.f32 %v838, 0.1
        %v858 = vmul.f32 %v765, 0.1
        %v859 = vmul.f32 %v767, 0.1
        %v860 = vmul.f32 %v842, 0.1
        %v861 = vmul.f32 %v844, 0.1
        %v862 = vsel %vm846, %v759, %v854
        %v863 = vsel %vm847, %v761, %v855
        %v864 = vsel %vm848, %v836, %v856
        %v865 = vsel %vm849, %v838, %v857
        %v866 = vsel %vm850, %v765, %v858
        %v867 = vsel %vm851, %v767, %v859
        %v868 = vsel %vm852, %v842, %v860
        %v869 = vsel %vm853, %v844, %v861
        %870 = vst [vmem:[%s273] sm:$0xff] %v862
        %871 = vst [vmem:[%s273 + $0x8] sm:$0xff] %v863
        %872 = vst [vmem:[%s273 + $0x10] sm:$0xff] %v864
        %873 = vst [vmem:[%s273 + $0x18] sm:$0xff] %v865
        %874 = vst [vmem:[%s273 + $0x20] sm:$0xff] %v866
        %875 = vst [vmem:[%s273 + $0x28] sm:$0xff] %v867
        %876 = vst [vmem:[%s273 + $0x30] sm:$0xff] %v868
        %877 = vst [vmem:[%s273 + $0x38] sm:$0xff] %v869
        %s878 = sand.u32 %s162, 1
        %s879 = scalar_lea.sflag [#allocation3], %s878
        %s880 = sand.u32 %s162, 1
        %s881 = smul.addr %s880, 64
        %s882 = scalar_lea.vmem [#allocation2], %s881
        // Predicated region
        $region41: #{tpu_custom_call.1} parent=39 // pred_check
          %p883 = pneg %p172
        $region42: #{tpu_custom_call.1} parent=39 // pred_check_branch
          %885 = sbr.rel (%p883) target = $region44
        $region43: #{tpu_custom_call.1} parent=39 // pred_region
          %s886 = smul.u32 4, %s24
          %s888 = ssub.s32 1024, 1024
          %889 = vsyncadd %s879, %s888
          %s890 = smul.addr %s23, 16
          %s891 = sadd.s32 %s886, %s890
          %s892 = smul.addr %s891, 128
          %s893 = scalar_lea.hbm %s5, %s892
          %s894 = sshll.u32 %s882, 4
          %s895 = int_to_ptr.vmem [resolvable:$true] %s894
          %900 = dma.vmem_to_hbm [thread:$0]  %s895, 1024, %s893, %s879, 512, 1024, 32
        $region44: #{tpu_custom_call.1} parent=39 // pred_fallthru
          _
      $region40: #{tpu_custom_call.1} parent=5 // pred_fallthru
        _
      %p901 = scmp.le.s32.totalorder 2, %s14
      // Predicated region
      $region45: #{tpu_custom_call.1} parent=5 // pred_check
        %p902 = pneg %p901
      $region46: #{tpu_custom_call.1} parent=5 // pred_check_branch
        %904 = sbr.rel (%p902) target = $region48
      $region47: #{tpu_custom_call.1} parent=5 // pred_region
        %s905 = ssub.s32 %s14, 2
        // Predicated region
        $region49: #{tpu_custom_call.1} parent=47 // pred_check
          %p906 = pneg %p178
        $region50: #{tpu_custom_call.1} parent=47 // pred_check_branch
          %908 = sbr.rel (%p906) target = $region52
        $region51: #{tpu_custom_call.1} parent=47 // pred_region
          %s909 = sand.u32 %s163, 1
          %s910 = scalar_lea.sflag [#allocation3], %s909
          %s911 = sand.u32 %s163, 1
          %s912 = smul.addr %s911, 64
          %s913 = scalar_lea.vmem [#allocation2], %s912
          %914 = dma.done %s910, 1024
        $region52: #{tpu_custom_call.1} parent=47 // pred_fallthru
          _
      $region48: #{tpu_custom_call.1} parent=5 // pred_fallthru
        _
    $region6: #{tpu_custom_call.1} parent=1 // loop_footer
      %s18 = sadd.s32 1, %s14
    $region7: #{tpu_custom_call.1} parent=1 // loop_footer_branch
      %13 = sbr.rel target = $region3
    $region8: #{tpu_custom_call.1} parent=1 // loop_exit
      _
    %915 = vsyncpa [#allocation3], 1
    %s916 = scalar_lea.sflag [#allocation3], 1
    %917 = vsyncpa %s916, 1

</llo_original>
